<compile_context>
chip_gen: v7x
topology: tpu7x:2x2x1
jax: 0.10.0
libtpu: 0.0.40
codegen_flags: <defaults>
</compile_context>

<pallas_src>
import functools

import jax
import jax.numpy as jnp
from jax.experimental import pallas as pl
from jax.experimental.pallas import tpu as pltpu

# Logical (PyTorch) dims and their lane-padded counterparts.
D_IN, H1, H2, D_OUT = 500, 400, 100, 2
D_IN_P, H1_P, H2_P, D_OUT_P = 512, 512, 128, 128


def _round_up(x, m):
    return (x + m - 1) // m * m


def _pad2(a, rows, cols):
    return jnp.pad(a, ((0, rows - a.shape[0]), (0, cols - a.shape[1])))


def mlp_kernel(x_ref, w1_ref, b1_ref, w2_ref, b2_ref, w3_ref, b3_ref, o_ref):
    # fc1 + relu (bf16 operands, f32 accumulation)
    h1 = jnp.dot(x_ref[...], w1_ref[...], preferred_element_type=jnp.float32)
    h1 = jnp.maximum(h1 + b1_ref[...], 0.0)
    # fc2 + relu
    h2 = jnp.dot(h1.astype(jnp.bfloat16), w2_ref[...],
                 preferred_element_type=jnp.float32)
    h2 = jnp.maximum(h2 + b2_ref[...], 0.0)
    # fc3 + sigmoid
    logits = jnp.dot(h2.astype(jnp.bfloat16), w3_ref[...],
                     preferred_element_type=jnp.float32)
    o_ref[...] = jax.nn.sigmoid(logits + b3_ref[...]).astype(o_ref.dtype)


@functools.partial(jax.jit, static_argnames=("tb",))
def simple_neural_network(x, w1, b1, w2, b2, w3, b3, *, tb=512):
    """x: [B, 500] f32; weights stored as [in, out] f32; returns [B, 2] f32.

    tb: max batch tile. At large B this gives a pipelined, megacore-parallel
    grid with the ~0.7 MiB of bf16 weights resident in VMEM. Sized for the
    smallest VMEM budget (v7x 64 MiB physical / 32 MiB scoped; v5e 16 MiB
    scoped): a 512x512 bf16 x tile is 0.5 MiB double-buffered.
    """
    B = x.shape[0]
    TB = min(tb, _round_up(B, 8))        # sublane-aligned batch tile
    B_pad = _round_up(B, TB)
    grid = (B_pad // TB,)

    # Pad ragged dims with zeros (mathematically a no-op for the real outputs)
    # and cast matmul operands to bf16; biases stay f32.
    x_p = _pad2(x, B_pad, D_IN_P).astype(jnp.bfloat16)
    w1_p = _pad2(w1, D_IN_P, H1_P).astype(jnp.bfloat16)
    b1_p = _pad2(b1, 1, H1_P).astype(jnp.float32)
    w2_p = _pad2(w2, H1_P, H2_P).astype(jnp.bfloat16)
    b2_p = _pad2(b2, 1, H2_P).astype(jnp.float32)
    w3_p = _pad2(w3, H2_P, D_OUT_P).astype(jnp.bfloat16)
    b3_p = _pad2(b3, 1, D_OUT_P).astype(jnp.float32)

    # Weights/biases: constant index_map -> DMA'd once, resident across the grid.
    resident = lambda shape: pl.BlockSpec(shape, lambda i: (0, 0))

    out = pl.pallas_call(
        mlp_kernel,
        out_shape=jax.ShapeDtypeStruct((B_pad, D_OUT_P), jnp.float32),
        grid=grid,
        in_specs=[
            pl.BlockSpec((TB, D_IN_P), lambda i: (i, 0)),   # x: batch-tiled
            resident((D_IN_P, H1_P)), resident((1, H1_P)),
            resident((H1_P, H2_P)), resident((1, H2_P)),
            resident((H2_P, D_OUT_P)), resident((1, D_OUT_P)),
        ],
        out_specs=pl.BlockSpec((TB, D_OUT_P), lambda i: (i, 0)),
        compiler_params=pltpu.CompilerParams(
            dimension_semantics=("parallel",),
            vmem_limit_bytes=32 << 20,
        ),
    )(x_p, w1_p, b1_p, w2_p, b2_p, w3_p, b3_p)

    return out[:B, :D_OUT]


def init_params(key):
    """Deterministic init mimicking nn.Linear's uniform(-1/sqrt(fan_in)) scale.

    Weights stored as [in, out] (transposed vs torch) so the kernel computes
    x @ W + b directly; biases as [1, out] rows.
    """
    ks = jax.random.split(key, 6)

    def linear(kw, kb, fan_in, fan_out):
        bound = 1.0 / jnp.sqrt(fan_in)
        w = jax.random.uniform(kw, (fan_in, fan_out), jnp.float32, -bound, bound)
        b = jax.random.uniform(kb, (1, fan_out), jnp.float32, -bound, bound)
        return w, b

    w1, b1 = linear(ks[0], ks[1], D_IN, H1)
    w2, b2 = linear(ks[2], ks[3], H1, H2)
    w3, b3 = linear(ks[4], ks[5], H2, D_OUT)
    return w1, b1, w2, b2, w3, b3


def _reference(x, w1, b1, w2, b2, w3, b3):
    h = jnp.maximum(x @ w1 + b1, 0.0)
    h = jnp.maximum(h @ w2 + b2, 0.0)
    return jax.nn.sigmoid(h @ w3 + b3)


if __name__ == "__main__":
    key = jax.random.PRNGKey(0)
    k_x, k_p = jax.random.split(key)
    params = init_params(k_p)

    # Small single-tile case.
    B = 8
    x = jax.random.normal(k_x, (B, D_IN), jnp.float32)
    out = jax.block_until_ready(simple_neural_network(x, *params))
    ref = _reference(x, *params)
    assert out.shape == (B, D_OUT)
    assert jnp.allclose(out, ref, atol=2e-2, rtol=2e-2), float(
        jnp.max(jnp.abs(out - ref)))

    # Multi-step grid case (tb=8 -> grid=(2,)) to exercise the batch pipeline
    # with resident weights.
    B2 = 16
    x2 = jax.random.normal(jax.random.PRNGKey(1), (B2, D_IN), jnp.float32)
    out2 = jax.block_until_ready(simple_neural_network(x2, *params, tb=8))
    ref2 = _reference(x2, *params)
    assert out2.shape == (B2, D_OUT)
    assert jnp.allclose(out2, ref2, atol=2e-2, rtol=2e-2), float(
        jnp.max(jnp.abs(out2 - ref2)))

    print("KERNEL_OK")
</pallas_src>

<mosaic_0001>
module attributes {stable_mosaic.version = 11 : i64} {
  func.func @mlp_kernel(%arg0: i32, %arg1: memref<8x512xbf16, #tpu.memory_space<vmem>>, %arg2: memref<512x512xbf16, #tpu.memory_space<vmem>>, %arg3: memref<1x512xf32, #tpu.memory_space<vmem>>, %arg4: memref<512x128xbf16, #tpu.memory_space<vmem>>, %arg5: memref<1x128xf32, #tpu.memory_space<vmem>>, %arg6: memref<128x128xbf16, #tpu.memory_space<vmem>>, %arg7: memref<1x128xf32, #tpu.memory_space<vmem>>, %arg8: memref<8x128xf32, #tpu.memory_space<vmem>>) attributes {dimension_semantics = [#tpu.dimension_semantics<parallel>], iteration_bounds = array<i64: 1>, scalar_prefetch = 0 : i64, scratch_operands = 0 : i64, tpu.core_type = #tpu.core_type<tc>, window_params = [{transform_indices = @transform_0, window_bounds = array<i64: 8, 512>}, {pipeline_mode = #tpu.pipeline_mode<synchronous>, transform_indices = @transform_1, window_bounds = array<i64: 512, 512>}, {pipeline_mode = #tpu.pipeline_mode<synchronous>, transform_indices = @transform_2, window_bounds = array<i64: 1, 512>}, {pipeline_mode = #tpu.pipeline_mode<synchronous>, transform_indices = @transform_3, window_bounds = array<i64: 512, 128>}, {pipeline_mode = #tpu.pipeline_mode<synchronous>, transform_indices = @transform_4, window_bounds = array<i64: 1, 128>}, {pipeline_mode = #tpu.pipeline_mode<synchronous>, transform_indices = @transform_5, window_bounds = array<i64: 128, 128>}, {pipeline_mode = #tpu.pipeline_mode<synchronous>, transform_indices = @transform_6, window_bounds = array<i64: 1, 128>}, {transform_indices = @transform_7, window_bounds = array<i64: 8, 128>}]} {
    %c0 = arith.constant 0 : index
    %c0_0 = arith.constant 0 : index
    %0 = vector.load %arg1[%c0, %c0_0] : memref<8x512xbf16, #tpu.memory_space<vmem>>, vector<8x512xbf16>
    %c0_1 = arith.constant 0 : index
    %c0_2 = arith.constant 0 : index
    %1 = vector.load %arg2[%c0_1, %c0_2] : memref<512x512xbf16, #tpu.memory_space<vmem>>, vector<512x512xbf16>
    %cst = arith.constant dense<0.000000e+00> : vector<8x512xf32>
    %2 = tpu.matmul %0, %1, %cst {dimension_numbers = #tpu.dot_dimension_numbers<[1], [0], [0], [1], [0, 0, 1, 1], [], []>} : vector<8x512xbf16>, vector<512x512xbf16>, vector<8x512xf32> -> vector<8x512xf32>
    %c0_3 = arith.constant 0 : index
    %c0_4 = arith.constant 0 : index
    %3 = vector.load %arg3[%c0_3, %c0_4] : memref<1x512xf32, #tpu.memory_space<vmem>>, vector<1x512xf32>
    %4 = vector.broadcast %3 : vector<1x512xf32> to vector<8x512xf32>
    %5 = arith.addf %2, %4 : vector<8x512xf32>
    %cst_5 = arith.constant 0.000000e+00 : f32
    %6 = vector.broadcast %cst_5 : f32 to vector<8x512xf32>
    %7 = arith.maximumf %5, %6 : vector<8x512xf32>
    %8 = arith.truncf %7 : vector<8x512xf32> to vector<8x512xbf16>
    %c0_6 = arith.constant 0 : index
    %c0_7 = arith.constant 0 : index
    %9 = vector.load %arg4[%c0_6, %c0_7] : memref<512x128xbf16, #tpu.memory_space<vmem>>, vector<512x128xbf16>
    %cst_8 = arith.constant dense<0.000000e+00> : vector<8x128xf32>
    %10 = tpu.matmul %8, %9, %cst_8 {dimension_numbers = #tpu.dot_dimension_numbers<[1], [0], [0], [1], [0, 0, 1, 1], [], []>} : vector<8x512xbf16>, vector<512x128xbf16>, vector<8x128xf32> -> vector<8x128xf32>
    %c0_9 = arith.constant 0 : index
    %c0_10 = arith.constant 0 : index
    %11 = vector.load %arg5[%c0_9, %c0_10] : memref<1x128xf32, #tpu.memory_space<vmem>>, vector<1x128xf32>
    %12 = vector.broadcast %11 : vector<1x128xf32> to vector<8x128xf32>
    %13 = arith.addf %10, %12 : vector<8x128xf32>
    %cst_11 = arith.constant 0.000000e+00 : f32
    %14 = vector.broadcast %cst_11 : f32 to vector<8x128xf32>
    %15 = arith.maximumf %13, %14 : vector<8x128xf32>
    %16 = arith.truncf %15 : vector<8x128xf32> to vector<8x128xbf16>
    %c0_12 = arith.constant 0 : index
    %c0_13 = arith.constant 0 : index
    %17 = vector.load %arg6[%c0_12, %c0_13] : memref<128x128xbf16, #tpu.memory_space<vmem>>, vector<128x128xbf16>
    %cst_14 = arith.constant dense<0.000000e+00> : vector<8x128xf32>
    %18 = tpu.matmul %16, %17, %cst_14 {dimension_numbers = #tpu.dot_dimension_numbers<[1], [0], [0], [1], [0, 0, 1, 1], [], []>} : vector<8x128xbf16>, vector<128x128xbf16>, vector<8x128xf32> -> vector<8x128xf32>
    %c0_15 = arith.constant 0 : index
    %c0_16 = arith.constant 0 : index
    %19 = vector.load %arg7[%c0_15, %c0_16] : memref<1x128xf32, #tpu.memory_space<vmem>>, vector<1x128xf32>
    %20 = vector.broadcast %19 : vector<1x128xf32> to vector<8x128xf32>
    %21 = arith.addf %18, %20 : vector<8x128xf32>
    %22 = arith.negf %21 : vector<8x128xf32>
    %23 = math.exp %22 : vector<8x128xf32>
    %cst_17 = arith.constant 1.000000e+00 : f32
    %24 = vector.broadcast %cst_17 : f32 to vector<8x128xf32>
    %25 = arith.addf %24, %23 : vector<8x128xf32>
    %26 = arith.divf %24, %25 : vector<8x128xf32>
    %c0_18 = arith.constant 0 : index
    %c0_19 = arith.constant 0 : index
    %27 = vector.load %arg8[%c0_18, %c0_19] : memref<8x128xf32, #tpu.memory_space<vmem>>, vector<8x128xf32>
    tpu.vector_store %arg8[%c0_18, %c0_19], %26 {strides = array<i32>} : memref<8x128xf32, #tpu.memory_space<vmem>>, vector<8x128xf32>,
    return
  }
  func.func @transform_0(%arg0: i32) -> (i32, i32) {
    %c0_i32 = arith.constant 0 : i32
    %c0_i32_0 = arith.constant 0 : i32
    return %arg0, %c0_i32 : i32, i32
  }
  func.func @transform_1(%arg0: i32) -> (i32, i32) {
    %c0_i32 = arith.constant 0 : i32
    %c0_i32_0 = arith.constant 0 : i32
    %c0_i32_1 = arith.constant 0 : i32
    return %c0_i32, %c0_i32_0 : i32, i32
  }
  func.func @transform_2(%arg0: i32) -> (i32, i32) {
    %c0_i32 = arith.constant 0 : i32
    %c0_i32_0 = arith.constant 0 : i32
    %c0_i32_1 = arith.constant 0 : i32
    return %c0_i32, %c0_i32_0 : i32, i32
  }
  func.func @transform_3(%arg0: i32) -> (i32, i32) {
    %c0_i32 = arith.constant 0 : i32
    %c0_i32_0 = arith.constant 0 : i32
    %c0_i32_1 = arith.constant 0 : i32
    return %c0_i32, %c0_i32_0 : i32, i32
  }
  func.func @transform_4(%arg0: i32) -> (i32, i32) {
    %c0_i32 = arith.constant 0 : i32
    %c0_i32_0 = arith.constant 0 : i32
    %c0_i32_1 = arith.constant 0 : i32
    return %c0_i32, %c0_i32_0 : i32, i32
  }
  func.func @transform_5(%arg0: i32) -> (i32, i32) {
    %c0_i32 = arith.constant 0 : i32
    %c0_i32_0 = arith.constant 0 : i32
    %c0_i32_1 = arith.constant 0 : i32
    return %c0_i32, %c0_i32_0 : i32, i32
  }
  func.func @transform_6(%arg0: i32) -> (i32, i32) {
    %c0_i32 = arith.constant 0 : i32
    %c0_i32_0 = arith.constant 0 : i32
    %c0_i32_1 = arith.constant 0 : i32
    return %c0_i32, %c0_i32_0 : i32, i32
  }
  func.func @transform_7(%arg0: i32) -> (i32, i32) {
    %c0_i32 = arith.constant 0 : i32
    %c0_i32_0 = arith.constant 0 : i32
    return %arg0, %c0_i32 : i32, i32
  }
}

</mosaic_0001>

<llo_original>
// kernel: simple_neural_network.1
$region0: #{simple_neural_network.1}
  #allocation0 [shape = 'u32[]', space=smem, size = 0x4, offset = 0x4, fixed_abs, tag = 'smem constant byte address 0x4 - core index']
  #allocation1 [shape = 'u32[144,128]{1,0:T(1,128)}', space=vmem, size = 0x12000, scoped, tag = 'internal scratch']
  %s0 = inlined_call_operand.vmem [shape: bf16[8,512], index: 0, kind: input, shape index: {}]
  %s1 = inlined_call_operand.vmem [shape: bf16[512,512], index: 1, kind: input, shape index: {}]
  %s2 = inlined_call_operand.vmem [shape: f32[1,512], index: 2, kind: input, shape index: {}]
  %s3 = inlined_call_operand.vmem [shape: bf16[512,128], index: 3, kind: input, shape index: {}]
  %s4 = inlined_call_operand.vmem [shape: f32[1,128], index: 4, kind: input, shape index: {}]
  %s5 = inlined_call_operand.vmem [shape: bf16[128,128], index: 5, kind: input, shape index: {}]
  %s6 = inlined_call_operand.vmem [shape: f32[1,128], index: 6, kind: input, shape index: {}]
  %s7 = inlined_call_operand.vmem [shape: f32[8,128], index: 7, kind: output, shape index: {}]
  %s8 = sld [smem:[#allocation0]]
  $region38: #{simple_neural_network.1} parent=0
    _
  %s10 = ssub.s32 1, %s8
  %s11 = scalar_select 0, %s10, %s8
  // Predicated region
  $region2: #{simple_neural_network.1} parent=0 // pred_check
    _
  $region3: #{simple_neural_network.1} parent=0 // pred_check_branch
    %13 = sbr.rel (0) target = $region5
  $region4: #{simple_neural_network.1} parent=0 // pred_region
    _
  $region5: #{simple_neural_network.1} parent=0 // pred_fallthru
    _
  // Predicated region
  $region6: #{simple_neural_network.1} parent=0 // pred_check
    _
  $region7: #{simple_neural_network.1} parent=0 // pred_check_branch
    %15 = sbr.rel (0) target = $region9
  $region8: #{simple_neural_network.1} parent=0 // pred_region
    _
  $region9: #{simple_neural_network.1} parent=0 // pred_fallthru
    _
  // Predicated region
  $region10: #{simple_neural_network.1} parent=0 // pred_check
    _
  $region11: #{simple_neural_network.1} parent=0 // pred_check_branch
    %17 = sbr.rel (0) target = $region13
  $region12: #{simple_neural_network.1} parent=0 // pred_region
    _
  $region13: #{simple_neural_network.1} parent=0 // pred_fallthru
    _
  // Predicated region
  $region14: #{simple_neural_network.1} parent=0 // pred_check
    _
  $region15: #{simple_neural_network.1} parent=0 // pred_check_branch
    %19 = sbr.rel (0) target = $region17
  $region16: #{simple_neural_network.1} parent=0 // pred_region
    _
  $region17: #{simple_neural_network.1} parent=0 // pred_fallthru
    _
  // Predicated region
  $region18: #{simple_neural_network.1} parent=0 // pred_check
    _
  $region19: #{simple_neural_network.1} parent=0 // pred_check_branch
    %21 = sbr.rel (0) target = $region21
  $region20: #{simple_neural_network.1} parent=0 // pred_region
    _
  $region21: #{simple_neural_network.1} parent=0 // pred_fallthru
    _
  // Predicated region
  $region22: #{simple_neural_network.1} parent=0 // pred_check
    _
  $region23: #{simple_neural_network.1} parent=0 // pred_check_branch
    %23 = sbr.rel (0) target = $region25
  $region24: #{simple_neural_network.1} parent=0 // pred_region
    _
  $region25: #{simple_neural_network.1} parent=0 // pred_fallthru
    _
  // Predicated region
  $region26: #{simple_neural_network.1} parent=0 // pred_check
    _
  $region27: #{simple_neural_network.1} parent=0 // pred_check_branch
    %25 = sbr.rel (0) target = $region29
  $region28: #{simple_neural_network.1} parent=0 // pred_region
    _
  $region29: #{simple_neural_network.1} parent=0 // pred_fallthru
    _
  %v27 = vld [vmem:[%s0] sm:$0xff]
  %v28 = vld [vmem:[%s0 + $0x8] sm:$0xff]
  %v29 = vld [vmem:[%s1] sm:$0xff]
  %v30 = vld [vmem:[%s1 + $0x8] sm:$0xff]
  %v31 = vld [vmem:[%s1 + $0x10] sm:$0xff]
  %v32 = vld [vmem:[%s1 + $0x18] sm:$0xff]
  %v33 = vld [vmem:[%s1 + $0x20] sm:$0xff]
  %v34 = vld [vmem:[%s1 + $0x28] sm:$0xff]
  %v35 = vld [vmem:[%s1 + $0x30] sm:$0xff]
  %v36 = vld [vmem:[%s1 + $0x38] sm:$0xff]
  %v37 = vld [vmem:[%s1 + $0x40] sm:$0xff]
  %v38 = vld [vmem:[%s1 + $0x48] sm:$0xff]
  %v39 = vld [vmem:[%s1 + $0x50] sm:$0xff]
  %v40 = vld [vmem:[%s1 + $0x58] sm:$0xff]
  %v41 = vld [vmem:[%s1 + $0x60] sm:$0xff]
  %v42 = vld [vmem:[%s1 + $0x68] sm:$0xff]
  %v43 = vld [vmem:[%s1 + $0x70] sm:$0xff]
  %v44 = vld [vmem:[%s1 + $0x78] sm:$0xff]
  %v45 = vld [vmem:[%s1 + $0x80] sm:$0xff]
  %v46 = vld [vmem:[%s1 + $0x88] sm:$0xff]
  %v47 = vld [vmem:[%s1 + $0x90] sm:$0xff]
  %v48 = vld [vmem:[%s1 + $0x98] sm:$0xff]
  %v49 = vld [vmem:[%s1 + $0xa0] sm:$0xff]
  %v50 = vld [vmem:[%s1 + $0xa8] sm:$0xff]
  %v51 = vld [vmem:[%s1 + $0xb0] sm:$0xff]
  %v52 = vld [vmem:[%s1 + $0xb8] sm:$0xff]
  %v53 = vld [vmem:[%s1 + $0xc0] sm:$0xff]
  %v54 = vld [vmem:[%s1 + $0xc8] sm:$0xff]
  %v55 = vld [vmem:[%s1 + $0xd0] sm:$0xff]
  %v56 = vld [vmem:[%s1 + $0xd8] sm:$0xff]
  %v57 = vld [vmem:[%s1 + $0xe0] sm:$0xff]
  %v58 = vld [vmem:[%s1 + $0xe8] sm:$0xff]
  %v59 = vld [vmem:[%s1 + $0xf0] sm:$0xff]
  %v60 = vld [vmem:[%s1 + $0xf8] sm:$0xff]
  %v61 = vld [vmem:[%s1 + $0x100] sm:$0xff]
  %v62 = vld [vmem:[%s1 + $0x108] sm:$0xff]
  %v63 = vld [vmem:[%s1 + $0x110] sm:$0xff]
  %v64 = vld [vmem:[%s1 + $0x118] sm:$0xff]
  %v65 = vld [vmem:[%s1 + $0x120] sm:$0xff]
  %v66 = vld [vmem:[%s1 + $0x128] sm:$0xff]
  %v67 = vld [vmem:[%s1 + $0x130] sm:$0xff]
  %v68 = vld [vmem:[%s1 + $0x138] sm:$0xff]
  %v69 = vld [vmem:[%s1 + $0x140] sm:$0xff]
  %v70 = vld [vmem:[%s1 + $0x148] sm:$0xff]
  %v71 = vld [vmem:[%s1 + $0x150] sm:$0xff]
  %v72 = vld [vmem:[%s1 + $0x158] sm:$0xff]
  %v73 = vld [vmem:[%s1 + $0x160] sm:$0xff]
  %v74 = vld [vmem:[%s1 + $0x168] sm:$0xff]
  %v75 = vld [vmem:[%s1 + $0x170] sm:$0xff]
  %v76 = vld [vmem:[%s1 + $0x178] sm:$0xff]
  %v77 = vld [vmem:[%s1 + $0x180] sm:$0xff]
  %v78 = vld [vmem:[%s1 + $0x188] sm:$0xff]
  %v79 = vld [vmem:[%s1 + $0x190] sm:$0xff]
  %v80 = vld [vmem:[%s1 + $0x198] sm:$0xff]
  %v81 = vld [vmem:[%s1 + $0x1a0] sm:$0xff]
  %v82 = vld [vmem:[%s1 + $0x1a8] sm:$0xff]
  %v83 = vld [vmem:[%s1 + $0x1b0] sm:$0xff]
  %v84 = vld [vmem:[%s1 + $0x1b8] sm:$0xff]
  %v85 = vld [vmem:[%s1 + $0x1c0] sm:$0xff]
  %v86 = vld [vmem:[%s1 + $0x1c8] sm:$0xff]
  %v87 = vld [vmem:[%s1 + $0x1d0] sm:$0xff]
  %v88 = vld [vmem:[%s1 + $0x1d8] sm:$0xff]
  %v89 = vld [vmem:[%s1 + $0x1e0] sm:$0xff]
  %v90 = vld [vmem:[%s1 + $0x1e8] sm:$0xff]
  %v91 = vld [vmem:[%s1 + $0x1f0] sm:$0xff]
  %v92 = vld [vmem:[%s1 + $0x1f8] sm:$0xff]
  %v93 = vld [vmem:[%s1 + $0x200] sm:$0xff]
  %v94 = vld [vmem:[%s1 + $0x208] sm:$0xff]
  %v95 = vld [vmem:[%s1 + $0x210] sm:$0xff]
  %v96 = vld [vmem:[%s1 + $0x218] sm:$0xff]
  %v97 = vld [vmem:[%s1 + $0x220] sm:$0xff]
  %v98 = vld [vmem:[%s1 + $0x228] sm:$0xff]
  %v99 = vld [vmem:[%s1 + $0x230] sm:$0xff]
  %v100 = vld [vmem:[%s1 + $0x238] sm:$0xff]
  %v101 = vld [vmem:[%s1 + $0x240] sm:$0xff]
  %v102 = vld [vmem:[%s1 + $0x248] sm:$0xff]
  %v103 = vld [vmem:[%s1 + $0x250] sm:$0xff]
  %v104 = vld [vmem:[%s1 + $0x258] sm:$0xff]
  %v105 = vld [vmem:[%s1 + $0x260] sm:$0xff]
  %v106 = vld [vmem:[%s1 + $0x268] sm:$0xff]
  %v107 = vld [vmem:[%s1 + $0x270] sm:$0xff]
  %v108 = vld [vmem:[%s1 + $0x278] sm:$0xff]
  %v109 = vld [vmem:[%s1 + $0x280] sm:$0xff]
  %v110 = vld [vmem:[%s1 + $0x288] sm:$0xff]
  %v111 = vld [vmem:[%s1 + $0x290] sm:$0xff]
  %v112 = vld [vmem:[%s1 + $0x298] sm:$0xff]
  %v113 = vld [vmem:[%s1 + $0x2a0] sm:$0xff]
  %v114 = vld [vmem:[%s1 + $0x2a8] sm:$0xff]
  %v115 = vld [vmem:[%s1 + $0x2b0] sm:$0xff]
  %v116 = vld [vmem:[%s1 + $0x2b8] sm:$0xff]
  %v117 = vld [vmem:[%s1 + $0x2c0] sm:$0xff]
  %v118 = vld [vmem:[%s1 + $0x2c8] sm:$0xff]
  %v119 = vld [vmem:[%s1 + $0x2d0] sm:$0xff]
  %v120 = vld [vmem:[%s1 + $0x2d8] sm:$0xff]
  %v121 = vld [vmem:[%s1 + $0x2e0] sm:$0xff]
  %v122 = vld [vmem:[%s1 + $0x2e8] sm:$0xff]
  %v123 = vld [vmem:[%s1 + $0x2f0] sm:$0xff]
  %v124 = vld [vmem:[%s1 + $0x2f8] sm:$0xff]
  %v125 = vld [vmem:[%s1 + $0x300] sm:$0xff]
  %v126 = vld [vmem:[%s1 + $0x308] sm:$0xff]
  %v127 = vld [vmem:[%s1 + $0x310] sm:$0xff]
  %v128 = vld [vmem:[%s1 + $0x318] sm:$0xff]
  %v129 = vld [vmem:[%s1 + $0x320] sm:$0xff]
  %v130 = vld [vmem:[%s1 + $0x328] sm:$0xff]
  %v131 = vld [vmem:[%s1 + $0x330] sm:$0xff]
  %v132 = vld [vmem:[%s1 + $0x338] sm:$0xff]
  %v133 = vld [vmem:[%s1 + $0x340] sm:$0xff]
  %v134 = vld [vmem:[%s1 + $0x348] sm:$0xff]
  %v135 = vld [vmem:[%s1 + $0x350] sm:$0xff]
  %v136 = vld [vmem:[%s1 + $0x358] sm:$0xff]
  %v137 = vld [vmem:[%s1 + $0x360] sm:$0xff]
  %v138 = vld [vmem:[%s1 + $0x368] sm:$0xff]
  %v139 = vld [vmem:[%s1 + $0x370] sm:$0xff]
  %v140 = vld [vmem:[%s1 + $0x378] sm:$0xff]
  %v141 = vld [vmem:[%s1 + $0x380] sm:$0xff]
  %v142 = vld [vmem:[%s1 + $0x388] sm:$0xff]
  %v143 = vld [vmem:[%s1 + $0x390] sm:$0xff]
  %v144 = vld [vmem:[%s1 + $0x398] sm:$0xff]
  %v145 = vld [vmem:[%s1 + $0x3a0] sm:$0xff]
  %v146 = vld [vmem:[%s1 + $0x3a8] sm:$0xff]
  %v147 = vld [vmem:[%s1 + $0x3b0] sm:$0xff]
  %v148 = vld [vmem:[%s1 + $0x3b8] sm:$0xff]
  %v149 = vld [vmem:[%s1 + $0x3c0] sm:$0xff]
  %v150 = vld [vmem:[%s1 + $0x3c8] sm:$0xff]
  %v151 = vld [vmem:[%s1 + $0x3d0] sm:$0xff]
  %v152 = vld [vmem:[%s1 + $0x3d8] sm:$0xff]
  %v153 = vld [vmem:[%s1 + $0x3e0] sm:$0xff]
  %v154 = vld [vmem:[%s1 + $0x3e8] sm:$0xff]
  %v155 = vld [vmem:[%s1 + $0x3f0] sm:$0xff]
  %v156 = vld [vmem:[%s1 + $0x3f8] sm:$0xff]
  %v157 = vld [vmem:[%s2] sm:$0xf]
  %v159 = vlaneseq
  %v160 = vshrl.u32 %v159, 7
  %v161 = vsub.s32 0, %v160
  %v162 = vrot.slane %v157, %v161
  %v163 = vlaneseq
  %v164 = vshrl.u32 %v163, 7
  %v165 = vsub.s32 1, %v164
  %v166 = vrot.slane %v157, %v165
  %v167 = vlaneseq
  %v168 = vshrl.u32 %v167, 7
  %v169 = vsub.s32 2, %v168
  %v170 = vrot.slane %v157, %v169
  %v171 = vlaneseq
  %v172 = vshrl.u32 %v171, 7
  %v173 = vsub.s32 3, %v172
  %v174 = vrot.slane %v157, %v173
  %v181 = vunpack.c.l.b16 %v27
  %v182 = vunpack.c.h.b16 %v27
  %v183 = vunpack.c.l.b16 %v28
  %v184 = vunpack.c.h.b16 %v28
  %v185 = vpack.c.b16 %v181, %v181
  %v186 = vpack.c.b16 %v182, %v182
  %v187 = vpack.c.b16 %v183, %v183
  %v188 = vpack.c.b16 %v184, %v184
  %v321 = vunpack.c.l.b16 %v29
  %v322 = vunpack.c.h.b16 %v29
  %v323 = vunpack.c.l.b16 %v30
  %v324 = vunpack.c.h.b16 %v30
  %v325 = vunpack.c.l.b16 %v31
  %v326 = vunpack.c.h.b16 %v31
  %v327 = vunpack.c.l.b16 %v32
  %v328 = vunpack.c.h.b16 %v32
  %v329 = vunpack.c.l.b16 %v33
  %v330 = vunpack.c.h.b16 %v33
  %v331 = vunpack.c.l.b16 %v34
  %v332 = vunpack.c.h.b16 %v34
  %v333 = vunpack.c.l.b16 %v35
  %v334 = vunpack.c.h.b16 %v35
  %v335 = vunpack.c.l.b16 %v36
  %v336 = vunpack.c.h.b16 %v36
  %v337 = vunpack.c.l.b16 %v37
  %v338 = vunpack.c.h.b16 %v37
  %v339 = vunpack.c.l.b16 %v38
  %v340 = vunpack.c.h.b16 %v38
  %v341 = vunpack.c.l.b16 %v39
  %v342 = vunpack.c.h.b16 %v39
  %v343 = vunpack.c.l.b16 %v40
  %v344 = vunpack.c.h.b16 %v40
  %v345 = vunpack.c.l.b16 %v41
  %v346 = vunpack.c.h.b16 %v41
  %v347 = vunpack.c.l.b16 %v42
  %v348 = vunpack.c.h.b16 %v42
  %v349 = vunpack.c.l.b16 %v43
  %v350 = vunpack.c.h.b16 %v43
  %v351 = vunpack.c.l.b16 %v44
  %v352 = vunpack.c.h.b16 %v44
  %v353 = vunpack.c.l.b16 %v45
  %v354 = vunpack.c.h.b16 %v45
  %v355 = vunpack.c.l.b16 %v46
  %v356 = vunpack.c.h.b16 %v46
  %v357 = vunpack.c.l.b16 %v47
  %v358 = vunpack.c.h.b16 %v47
  %v359 = vunpack.c.l.b16 %v48
  %v360 = vunpack.c.h.b16 %v48
  %v361 = vunpack.c.l.b16 %v49
  %v362 = vunpack.c.h.b16 %v49
  %v363 = vunpack.c.l.b16 %v50
  %v364 = vunpack.c.h.b16 %v50
  %v365 = vunpack.c.l.b16 %v51
  %v366 = vunpack.c.h.b16 %v51
  %v367 = vunpack.c.l.b16 %v52
  %v368 = vunpack.c.h.b16 %v52
  %v369 = vunpack.c.l.b16 %v53
  %v370 = vunpack.c.h.b16 %v53
  %v371 = vunpack.c.l.b16 %v54
  %v372 = vunpack.c.h.b16 %v54
  %v373 = vunpack.c.l.b16 %v55
  %v374 = vunpack.c.h.b16 %v55
  %v375 = vunpack.c.l.b16 %v56
  %v376 = vunpack.c.h.b16 %v56
  %v377 = vunpack.c.l.b16 %v57
  %v378 = vunpack.c.h.b16 %v57
  %v379 = vunpack.c.l.b16 %v58
  %v380 = vunpack.c.h.b16 %v58
  %v381 = vunpack.c.l.b16 %v59
  %v382 = vunpack.c.h.b16 %v59
  %v383 = vunpack.c.l.b16 %v60
  %v384 = vunpack.c.h.b16 %v60
  %v385 = vunpack.c.l.b16 %v61
  %v386 = vunpack.c.h.b16 %v61
  %v387 = vunpack.c.l.b16 %v62
  %v388 = vunpack.c.h.b16 %v62
  %v389 = vunpack.c.l.b16 %v63
  %v390 = vunpack.c.h.b16 %v63
  %v391 = vunpack.c.l.b16 %v64
  %v392 = vunpack.c.h.b16 %v64
  %v393 = vunpack.c.l.b16 %v65
  %v394 = vunpack.c.h.b16 %v65
  %v395 = vunpack.c.l.b16 %v66
  %v396 = vunpack.c.h.b16 %v66
  %v397 = vunpack.c.l.b16 %v67
  %v398 = vunpack.c.h.b16 %v67
  %v399 = vunpack.c.l.b16 %v68
  %v400 = vunpack.c.h.b16 %v68
  %v401 = vunpack.c.l.b16 %v69
  %v402 = vunpack.c.h.b16 %v69
  %v403 = vunpack.c.l.b16 %v70
  %v404 = vunpack.c.h.b16 %v70
  %v405 = vunpack.c.l.b16 %v71
  %v406 = vunpack.c.h.b16 %v71
  %v407 = vunpack.c.l.b16 %v72
  %v408 = vunpack.c.h.b16 %v72
  %v409 = vunpack.c.l.b16 %v73
  %v410 = vunpack.c.h.b16 %v73
  %v411 = vunpack.c.l.b16 %v74
  %v412 = vunpack.c.h.b16 %v74
  %v413 = vunpack.c.l.b16 %v75
  %v414 = vunpack.c.h.b16 %v75
  %v415 = vunpack.c.l.b16 %v76
  %v416 = vunpack.c.h.b16 %v76
  %v417 = vunpack.c.l.b16 %v77
  %v418 = vunpack.c.h.b16 %v77
  %v419 = vunpack.c.l.b16 %v78
  %v420 = vunpack.c.h.b16 %v78
  %v421 = vunpack.c.l.b16 %v79
  %v422 = vunpack.c.h.b16 %v79
  %v423 = vunpack.c.l.b16 %v80
  %v424 = vunpack.c.h.b16 %v80
  %v425 = vunpack.c.l.b16 %v81
  %v426 = vunpack.c.h.b16 %v81
  %v427 = vunpack.c.l.b16 %v82
  %v428 = vunpack.c.h.b16 %v82
  %v429 = vunpack.c.l.b16 %v83
  %v430 = vunpack.c.h.b16 %v83
  %v431 = vunpack.c.l.b16 %v84
  %v432 = vunpack.c.h.b16 %v84
  %v433 = vunpack.c.l.b16 %v85
  %v434 = vunpack.c.h.b16 %v85
  %v435 = vunpack.c.l.b16 %v86
  %v436 = vunpack.c.h.b16 %v86
  %v437 = vunpack.c.l.b16 %v87
  %v438 = vunpack.c.h.b16 %v87
  %v439 = vunpack.c.l.b16 %v88
  %v440 = vunpack.c.h.b16 %v88
  %v441 = vunpack.c.l.b16 %v89
  %v442 = vunpack.c.h.b16 %v89
  %v443 = vunpack.c.l.b16 %v90
  %v444 = vunpack.c.h.b16 %v90
  %v445 = vunpack.c.l.b16 %v91
  %v446 = vunpack.c.h.b16 %v91
  %v447 = vunpack.c.l.b16 %v92
  %v448 = vunpack.c.h.b16 %v92
  %v449 = vunpack.c.l.b16 %v93
  %v450 = vunpack.c.h.b16 %v93
  %v451 = vunpack.c.l.b16 %v94
  %v452 = vunpack.c.h.b16 %v94
  %v453 = vunpack.c.l.b16 %v95
  %v454 = vunpack.c.h.b16 %v95
  %v455 = vunpack.c.l.b16 %v96
  %v456 = vunpack.c.h.b16 %v96
  %v457 = vunpack.c.l.b16 %v97
  %v458 = vunpack.c.h.b16 %v97
  %v459 = vunpack.c.l.b16 %v98
  %v460 = vunpack.c.h.b16 %v98
  %v461 = vunpack.c.l.b16 %v99
  %v462 = vunpack.c.h.b16 %v99
  %v463 = vunpack.c.l.b16 %v100
  %v464 = vunpack.c.h.b16 %v100
  %v465 = vunpack.c.l.b16 %v101
  %v466 = vunpack.c.h.b16 %v101
  %v467 = vunpack.c.l.b16 %v102
  %v468 = vunpack.c.h.b16 %v102
  %v469 = vunpack.c.l.b16 %v103
  %v470 = vunpack.c.h.b16 %v103
  %v471 = vunpack.c.l.b16 %v104
  %v472 = vunpack.c.h.b16 %v104
  %v473 = vunpack.c.l.b16 %v105
  %v474 = vunpack.c.h.b16 %v105
  %v475 = vunpack.c.l.b16 %v106
  %v476 = vunpack.c.h.b16 %v106
  %v477 = vunpack.c.l.b16 %v107
  %v478 = vunpack.c.h.b16 %v107
  %v479 = vunpack.c.l.b16 %v108
  %v480 = vunpack.c.h.b16 %v108
  %v481 = vunpack.c.l.b16 %v109
  %v482 = vunpack.c.h.b16 %v109
  %v483 = vunpack.c.l.b16 %v110
  %v484 = vunpack.c.h.b16 %v110
  %v485 = vunpack.c.l.b16 %v111
  %v486 = vunpack.c.h.b16 %v111
  %v487 = vunpack.c.l.b16 %v112
  %v488 = vunpack.c.h.b16 %v112
  %v489 = vunpack.c.l.b16 %v113
  %v490 = vunpack.c.h.b16 %v113
  %v491 = vunpack.c.l.b16 %v114
  %v492 = vunpack.c.h.b16 %v114
  %v493 = vunpack.c.l.b16 %v115
  %v494 = vunpack.c.h.b16 %v115
  %v495 = vunpack.c.l.b16 %v116
  %v496 = vunpack.c.h.b16 %v116
  %v497 = vunpack.c.l.b16 %v117
  %v498 = vunpack.c.h.b16 %v117
  %v499 = vunpack.c.l.b16 %v118
  %v500 = vunpack.c.h.b16 %v118
  %v501 = vunpack.c.l.b16 %v119
  %v502 = vunpack.c.h.b16 %v119
  %v503 = vunpack.c.l.b16 %v120
  %v504 = vunpack.c.h.b16 %v120
  %v505 = vunpack.c.l.b16 %v121
  %v506 = vunpack.c.h.b16 %v121
  %v507 = vunpack.c.l.b16 %v122
  %v508 = vunpack.c.h.b16 %v122
  %v509 = vunpack.c.l.b16 %v123
  %v510 = vunpack.c.h.b16 %v123
  %v511 = vunpack.c.l.b16 %v124
  %v512 = vunpack.c.h.b16 %v124
  %v513 = vunpack.c.l.b16 %v125
  %v514 = vunpack.c.h.b16 %v125
  %v515 = vunpack.c.l.b16 %v126
  %v516 = vunpack.c.h.b16 %v126
  %v517 = vunpack.c.l.b16 %v127
  %v518 = vunpack.c.h.b16 %v127
  %v519 = vunpack.c.l.b16 %v128
  %v520 = vunpack.c.h.b16 %v128
  %v521 = vunpack.c.l.b16 %v129
  %v522 = vunpack.c.h.b16 %v129
  %v523 = vunpack.c.l.b16 %v130
  %v524 = vunpack.c.h.b16 %v130
  %v525 = vunpack.c.l.b16 %v131
  %v526 = vunpack.c.h.b16 %v131
  %v527 = vunpack.c.l.b16 %v132
  %v528 = vunpack.c.h.b16 %v132
  %v529 = vunpack.c.l.b16 %v133
  %v530 = vunpack.c.h.b16 %v133
  %v531 = vunpack.c.l.b16 %v134
  %v532 = vunpack.c.h.b16 %v134
  %v533 = vunpack.c.l.b16 %v135
  %v534 = vunpack.c.h.b16 %v135
  %v535 = vunpack.c.l.b16 %v136
  %v536 = vunpack.c.h.b16 %v136
  %v537 = vunpack.c.l.b16 %v137
  %v538 = vunpack.c.h.b16 %v137
  %v539 = vunpack.c.l.b16 %v138
  %v540 = vunpack.c.h.b16 %v138
  %v541 = vunpack.c.l.b16 %v139
  %v542 = vunpack.c.h.b16 %v139
  %v543 = vunpack.c.l.b16 %v140
  %v544 = vunpack.c.h.b16 %v140
  %v545 = vunpack.c.l.b16 %v141
  %v546 = vunpack.c.h.b16 %v141
  %v547 = vunpack.c.l.b16 %v142
  %v548 = vunpack.c.h.b16 %v142
  %v549 = vunpack.c.l.b16 %v143
  %v550 = vunpack.c.h.b16 %v143
  %v551 = vunpack.c.l.b16 %v144
  %v552 = vunpack.c.h.b16 %v144
  %v553 = vunpack.c.l.b16 %v145
  %v554 = vunpack.c.h.b16 %v145
  %v555 = vunpack.c.l.b16 %v146
  %v556 = vunpack.c.h.b16 %v146
  %v557 = vunpack.c.l.b16 %v147
  %v558 = vunpack.c.h.b16 %v147
  %v559 = vunpack.c.l.b16 %v148
  %v560 = vunpack.c.h.b16 %v148
  %v561 = vunpack.c.l.b16 %v149
  %v562 = vunpack.c.h.b16 %v149
  %v563 = vunpack.c.l.b16 %v150
  %v564 = vunpack.c.h.b16 %v150
  %v565 = vunpack.c.l.b16 %v151
  %v566 = vunpack.c.h.b16 %v151
  %v567 = vunpack.c.l.b16 %v152
  %v568 = vunpack.c.h.b16 %v152
  %v569 = vunpack.c.l.b16 %v153
  %v570 = vunpack.c.h.b16 %v153
  %v571 = vunpack.c.l.b16 %v154
  %v572 = vunpack.c.h.b16 %v154
  %v573 = vunpack.c.l.b16 %v155
  %v574 = vunpack.c.h.b16 %v155
  %v575 = vunpack.c.l.b16 %v156
  %v576 = vunpack.c.h.b16 %v156
  %v577 = vpack.c.b16 %v325, %v321
  %v578 = vpack.c.b16 %v326, %v322
  %v579 = vpack.c.b16 %v327, %v323
  %v580 = vpack.c.b16 %v328, %v324
  %v581 = vpack.c.b16 %v333, %v329
  %v582 = vpack.c.b16 %v334, %v330
  %v583 = vpack.c.b16 %v335, %v331
  %v584 = vpack.c.b16 %v336, %v332
  %v585 = vpack.c.b16 %v341, %v337
  %v586 = vpack.c.b16 %v342, %v338
  %v587 = vpack.c.b16 %v343, %v339
  %v588 = vpack.c.b16 %v344, %v340
  %v589 = vpack.c.b16 %v349, %v345
  %v590 = vpack.c.b16 %v350, %v346
  %v591 = vpack.c.b16 %v351, %v347
  %v592 = vpack.c.b16 %v352, %v348
  %v593 = vpack.c.b16 %v357, %v353
  %v594 = vpack.c.b16 %v358, %v354
  %v595 = vpack.c.b16 %v359, %v355
  %v596 = vpack.c.b16 %v360, %v356
  %v597 = vpack.c.b16 %v365, %v361
  %v598 = vpack.c.b16 %v366, %v362
  %v599 = vpack.c.b16 %v367, %v363
  %v600 = vpack.c.b16 %v368, %v364
  %v601 = vpack.c.b16 %v373, %v369
  %v602 = vpack.c.b16 %v374, %v370
  %v603 = vpack.c.b16 %v375, %v371
  %v604 = vpack.c.b16 %v376, %v372
  %v605 = vpack.c.b16 %v381, %v377
  %v606 = vpack.c.b16 %v382, %v378
  %v607 = vpack.c.b16 %v383, %v379
  %v608 = vpack.c.b16 %v384, %v380
  %v609 = vpack.c.b16 %v389, %v385
  %v610 = vpack.c.b16 %v390, %v386
  %v611 = vpack.c.b16 %v391, %v387
  %v612 = vpack.c.b16 %v392, %v388
  %v613 = vpack.c.b16 %v397, %v393
  %v614 = vpack.c.b16 %v398, %v394
  %v615 = vpack.c.b16 %v399, %v395
  %v616 = vpack.c.b16 %v400, %v396
  %v617 = vpack.c.b16 %v405, %v401
  %v618 = vpack.c.b16 %v406, %v402
  %v619 = vpack.c.b16 %v407, %v403
  %v620 = vpack.c.b16 %v408, %v404
  %v621 = vpack.c.b16 %v413, %v409
  %v622 = vpack.c.b16 %v414, %v410
  %v623 = vpack.c.b16 %v415, %v411
  %v624 = vpack.c.b16 %v416, %v412
  %v625 = vpack.c.b16 %v421, %v417
  %v626 = vpack.c.b16 %v422, %v418
  %v627 = vpack.c.b16 %v423, %v419
  %v628 = vpack.c.b16 %v424, %v420
  %v629 = vpack.c.b16 %v429, %v425
  %v630 = vpack.c.b16 %v430, %v426
  %v631 = vpack.c.b16 %v431, %v427
  %v632 = vpack.c.b16 %v432, %v428
  %v633 = vpack.c.b16 %v437, %v433
  %v634 = vpack.c.b16 %v438, %v434
  %v635 = vpack.c.b16 %v439, %v435
  %v636 = vpack.c.b16 %v440, %v436
  %v637 = vpack.c.b16 %v445, %v441
  %v638 = vpack.c.b16 %v446, %v442
  %v639 = vpack.c.b16 %v447, %v443
  %v640 = vpack.c.b16 %v448, %v444
  %v641 = vpack.c.b16 %v453, %v449
  %v642 = vpack.c.b16 %v454, %v450
  %v643 = vpack.c.b16 %v455, %v451
  %v644 = vpack.c.b16 %v456, %v452
  %v645 = vpack.c.b16 %v461, %v457
  %v646 = vpack.c.b16 %v462, %v458
  %v647 = vpack.c.b16 %v463, %v459
  %v648 = vpack.c.b16 %v464, %v460
  %v649 = vpack.c.b16 %v469, %v465
  %v650 = vpack.c.b16 %v470, %v466
  %v651 = vpack.c.b16 %v471, %v467
  %v652 = vpack.c.b16 %v472, %v468
  %v653 = vpack.c.b16 %v477, %v473
  %v654 = vpack.c.b16 %v478, %v474
  %v655 = vpack.c.b16 %v479, %v475
  %v656 = vpack.c.b16 %v480, %v476
  %v657 = vpack.c.b16 %v485, %v481
  %v658 = vpack.c.b16 %v486, %v482
  %v659 = vpack.c.b16 %v487, %v483
  %v660 = vpack.c.b16 %v488, %v484
  %v661 = vpack.c.b16 %v493, %v489
  %v662 = vpack.c.b16 %v494, %v490
  %v663 = vpack.c.b16 %v495, %v491
  %v664 = vpack.c.b16 %v496, %v492
  %v665 = vpack.c.b16 %v501, %v497
  %v666 = vpack.c.b16 %v502, %v498
  %v667 = vpack.c.b16 %v503, %v499
  %v668 = vpack.c.b16 %v504, %v500
  %v669 = vpack.c.b16 %v509, %v505
  %v670 = vpack.c.b16 %v510, %v506
  %v671 = vpack.c.b16 %v511, %v507
  %v672 = vpack.c.b16 %v512, %v508
  %v673 = vpack.c.b16 %v517, %v513
  %v674 = vpack.c.b16 %v518, %v514
  %v675 = vpack.c.b16 %v519, %v515
  %v676 = vpack.c.b16 %v520, %v516
  %v677 = vpack.c.b16 %v525, %v521
  %v678 = vpack.c.b16 %v526, %v522
  %v679 = vpack.c.b16 %v527, %v523
  %v680 = vpack.c.b16 %v528, %v524
  %v681 = vpack.c.b16 %v533, %v529
  %v682 = vpack.c.b16 %v534, %v530
  %v683 = vpack.c.b16 %v535, %v531
  %v684 = vpack.c.b16 %v536, %v532
  %v685 = vpack.c.b16 %v541, %v537
  %v686 = vpack.c.b16 %v542, %v538
  %v687 = vpack.c.b16 %v543, %v539
  %v688 = vpack.c.b16 %v544, %v540
  %v689 = vpack.c.b16 %v549, %v545
  %v690 = vpack.c.b16 %v550, %v546
  %v691 = vpack.c.b16 %v551, %v547
  %v692 = vpack.c.b16 %v552, %v548
  %v693 = vpack.c.b16 %v557, %v553
  %v694 = vpack.c.b16 %v558, %v554
  %v695 = vpack.c.b16 %v559, %v555
  %v696 = vpack.c.b16 %v560, %v556
  %v697 = vpack.c.b16 %v565, %v561
  %v698 = vpack.c.b16 %v566, %v562
  %v699 = vpack.c.b16 %v567, %v563
  %v700 = vpack.c.b16 %v568, %v564
  %v701 = vpack.c.b16 %v573, %v569
  %v702 = vpack.c.b16 %v574, %v570
  %v703 = vpack.c.b16 %v575, %v571
  %v704 = vpack.c.b16 %v576, %v572
  %833 = vmatprep.subr.bf16.mxu0 %v578
  %834 = vmatpush1.bf16.msra.mxu0 %v577
  %835 = vmatprep.subr.bf16.mxu0 %v582
  %836 = vmatpush1.bf16.msra.mxu0 %v581
  %837 = vmatprep.subr.bf16.mxu0 %v586
  %838 = vmatpush1.bf16.msra.mxu0 %v585
  %839 = vmatprep.subr.bf16.mxu0 %v590
  %840 = vmatpush1.bf16.msra.mxu0 %v589
  %841 = vmatprep.subr.bf16.mxu0 %v594
  %842 = vmatpush1.bf16.msra.mxu0 %v593
  %843 = vmatprep.subr.bf16.mxu0 %v598
  %844 = vmatpush1.bf16.msra.mxu0 %v597
  %845 = vmatprep.subr.bf16.mxu0 %v602
  %846 = vmatpush1.bf16.msra.mxu0 %v601
  %847 = vmatprep.subr.bf16.mxu0 %v606
  %848 = vmatpush1.bf16.msra.mxu0 %v605
  %849 = vmatprep.subr.bf16.mxu0 %v610
  %850 = vmatpush1.bf16.msra.mxu0 %v609
  %851 = vmatprep.subr.bf16.mxu0 %v614
  %852 = vmatpush1.bf16.msra.mxu0 %v613
  %853 = vmatprep.subr.bf16.mxu0 %v618
  %854 = vmatpush1.bf16.msra.mxu0 %v617
  %855 = vmatprep.subr.bf16.mxu0 %v622
  %856 = vmatpush1.bf16.msra.mxu0 %v621
  %857 = vmatprep.subr.bf16.mxu0 %v626
  %858 = vmatpush1.bf16.msra.mxu0 %v625
  %859 = vmatprep.subr.bf16.mxu0 %v630
  %860 = vmatpush1.bf16.msra.mxu0 %v629
  %861 = vmatprep.subr.bf16.mxu0 %v634
  %862 = vmatpush1.bf16.msra.mxu0 %v633
  %863 = vmatprep.subr.bf16.mxu0 %v638
  %864 = vmatpush1.bf16.msra.mxu0 %v637
  %865 = vmatprep.mubr.bf16.mxu0 %v186
  %866 = vmatmul.mubr.bf16.gmra.mrb[0].mxu0 %v185
  %v867 = vpop.f32.mrb[0].mxu0
  %v868 = vadd.f32 %v162, %v867
  %v869 = vpop.f32.mrb[0].mxu0
  %v870 = vadd.f32 %v166, %v869
  %v871 = vpop.f32.mrb[0].mxu0
  %v872 = vpop.f32.mrb[0].mxu0
  %873 = vdwg.mxu0
  %874 = vmatprep.subr.bf16.mxu0 %v642
  %875 = vmatpush1.bf16.msra.mxu0 %v641
  %876 = vmatprep.subr.bf16.mxu0 %v646
  %877 = vmatpush1.bf16.msra.mxu0 %v645
  %878 = vmatprep.subr.bf16.mxu0 %v650
  %879 = vmatpush1.bf16.msra.mxu0 %v649
  %880 = vmatprep.subr.bf16.mxu0 %v654
  %881 = vmatpush1.bf16.msra.mxu0 %v653
  %882 = vmatprep.subr.bf16.mxu0 %v658
  %883 = vmatpush1.bf16.msra.mxu0 %v657
  %884 = vmatprep.subr.bf16.mxu0 %v662
  %885 = vmatpush1.bf16.msra.mxu0 %v661
  %886 = vmatprep.subr.bf16.mxu0 %v666
  %887 = vmatpush1.bf16.msra.mxu0 %v665
  %888 = vmatprep.subr.bf16.mxu0 %v670
  %889 = vmatpush1.bf16.msra.mxu0 %v669
  %890 = vmatprep.subr.bf16.mxu0 %v674
  %891 = vmatpush1.bf16.msra.mxu0 %v673
  %892 = vmatprep.subr.bf16.mxu0 %v678
  %893 = vmatpush1.bf16.msra.mxu0 %v677
  %894 = vmatprep.subr.bf16.mxu0 %v682
  %895 = vmatpush1.bf16.msra.mxu0 %v681
  %896 = vmatprep.subr.bf16.mxu0 %v686
  %897 = vmatpush1.bf16.msra.mxu0 %v685
  %898 = vmatprep.subr.bf16.mxu0 %v690
  %899 = vmatpush1.bf16.msra.mxu0 %v689
  %900 = vmatprep.subr.bf16.mxu0 %v694
  %901 = vmatpush1.bf16.msra.mxu0 %v693
  %902 = vmatprep.subr.bf16.mxu0 %v698
  %903 = vmatpush1.bf16.msra.mxu0 %v697
  %904 = vmatprep.subr.bf16.mxu0 %v702
  %905 = vmatpush1.bf16.msra.mxu0 %v701
  %906 = vmatprep.mubr.bf16.mxu0 %v188
  %907 = vmatmul.mubr.bf16.gmra.mrb[0].mxu0 %v187
  %v908 = vpop.f32.mrb[0].mxu0
  %v909 = vadd.f32 %v868, %v908
  %v910 = vpop.f32.mrb[0].mxu0
  %v911 = vadd.f32 %v870, %v910
  %v912 = vpop.f32.mrb[0].mxu0
  %v913 = vpop.f32.mrb[0].mxu0
  %914 = vdwg.mxu0
  %915 = vmatprep.subr.bf16.mxu0 %v580
  %916 = vmatpush1.bf16.msra.mxu0 %v579
  %917 = vmatprep.subr.bf16.mxu0 %v584
  %918 = vmatpush1.bf16.msra.mxu0 %v583
  %919 = vmatprep.subr.bf16.mxu0 %v588
  %920 = vmatpush1.bf16.msra.mxu0 %v587
  %921 = vmatprep.subr.bf16.mxu0 %v592
  %922 = vmatpush1.bf16.msra.mxu0 %v591
  %923 = vmatprep.subr.bf16.mxu0 %v596
  %924 = vmatpush1.bf16.msra.mxu0 %v595
  %925 = vmatprep.subr.bf16.mxu0 %v600
  %926 = vmatpush1.bf16.msra.mxu0 %v599
  %927 = vmatprep.subr.bf16.mxu0 %v604
  %928 = vmatpush1.bf16.msra.mxu0 %v603
  %929 = vmatprep.subr.bf16.mxu0 %v608
  %930 = vmatpush1.bf16.msra.mxu0 %v607
  %931 = vmatprep.subr.bf16.mxu0 %v612
  %932 = vmatpush1.bf16.msra.mxu0 %v611
  %933 = vmatprep.subr.bf16.mxu0 %v616
  %934 = vmatpush1.bf16.msra.mxu0 %v615
  %935 = vmatprep.subr.bf16.mxu0 %v620
  %936 = vmatpush1.bf16.msra.mxu0 %v619
  %937 = vmatprep.subr.bf16.mxu0 %v624
  %938 = vmatpush1.bf16.msra.mxu0 %v623
  %939 = vmatprep.subr.bf16.mxu0 %v628
  %940 = vmatpush1.bf16.msra.mxu0 %v627
  %941 = vmatprep.subr.bf16.mxu0 %v632
  %942 = vmatpush1.bf16.msra.mxu0 %v631
  %943 = vmatprep.subr.bf16.mxu0 %v636
  %944 = vmatpush1.bf16.msra.mxu0 %v635
  %945 = vmatprep.subr.bf16.mxu0 %v640
  %946 = vmatpush1.bf16.msra.mxu0 %v639
  %947 = vmatprep.mubr.bf16.mxu0 %v186
  %948 = vmatmul.mubr.bf16.gmra.mrb[0].mxu0 %v185
  %v949 = vpop.f32.mrb[0].mxu0
  %v950 = vadd.f32 %v170, %v949
  %v951 = vpop.f32.mrb[0].mxu0
  %v952 = vadd.f32 %v174, %v951
  %v953 = vpop.f32.mrb[0].mxu0
  %v954 = vpop.f32.mrb[0].mxu0
  %955 = vdwg.mxu0
  %956 = vmatprep.subr.bf16.mxu0 %v644
  %957 = vmatpush1.bf16.msra.mxu0 %v643
  %958 = vmatprep.subr.bf16.mxu0 %v648
  %959 = vmatpush1.bf16.msra.mxu0 %v647
  %960 = vmatprep.subr.bf16.mxu0 %v652
  %961 = vmatpush1.bf16.msra.mxu0 %v651
  %962 = vmatprep.subr.bf16.mxu0 %v656
  %963 = vmatpush1.bf16.msra.mxu0 %v655
  %964 = vmatprep.subr.bf16.mxu0 %v660
  %965 = vmatpush1.bf16.msra.mxu0 %v659
  %966 = vmatprep.subr.bf16.mxu0 %v664
  %967 = vmatpush1.bf16.msra.mxu0 %v663
  %968 = vmatprep.subr.bf16.mxu0 %v668
  %969 = vmatpush1.bf16.msra.mxu0 %v667
  %970 = vmatprep.subr.bf16.mxu0 %v672
  %971 = vmatpush1.bf16.msra.mxu0 %v671
  %972 = vmatprep.subr.bf16.mxu0 %v676
  %973 = vmatpush1.bf16.msra.mxu0 %v675
  %974 = vmatprep.subr.bf16.mxu0 %v680
  %975 = vmatpush1.bf16.msra.mxu0 %v679
  %976 = vmatprep.subr.bf16.mxu0 %v684
  %977 = vmatpush1.bf16.msra.mxu0 %v683
  %978 = vmatprep.subr.bf16.mxu0 %v688
  %979 = vmatpush1.bf16.msra.mxu0 %v687
  %980 = vmatprep.subr.bf16.mxu0 %v692
  %981 = vmatpush1.bf16.msra.mxu0 %v691
  %982 = vmatprep.subr.bf16.mxu0 %v696
  %983 = vmatpush1.bf16.msra.mxu0 %v695
  %984 = vmatprep.subr.bf16.mxu0 %v700
  %985 = vmatpush1.bf16.msra.mxu0 %v699
  %986 = vmatprep.subr.bf16.mxu0 %v704
  %987 = vmatpush1.bf16.msra.mxu0 %v703
  %988 = vmatprep.mubr.bf16.mxu0 %v188
  %989 = vmatmul.mubr.bf16.gmra.mrb[0].mxu0 %v187
  %v990 = vpop.f32.mrb[0].mxu0
  %v991 = vadd.f32 %v950, %v990
  %v992 = vpop.f32.mrb[0].mxu0
  %v993 = vadd.f32 %v952, %v992
  %v994 = vpop.f32.mrb[0].mxu0
  %v995 = vpop.f32.mrb[0].mxu0
  %996 = vdwg.mxu0
  %v997 = vmax.f32 %v909, 0.0
  %v998 = vmax.f32 %v911, 0.0
  %v999 = vmax.f32 %v991, 0.0
  %v1000 = vmax.f32 %v993, 0.0
  %v1001 = vpack.c.bf16 %v997, %v997
  %v1002 = vpack.c.bf16 %v998, %v998
  %v1003 = vpack.c.bf16 %v999, %v999
  %v1004 = vpack.c.bf16 %v1000, %v1000
  %v1005 = vld [vmem:[%s3] sm:$0xf]
  %v1006 = vld [vmem:[%s3 + $0x4] sm:$0xf]
  %v1007 = vld [vmem:[%s3 + $0x8] sm:$0xf]
  %v1008 = vld [vmem:[%s3 + $0xc] sm:$0xf]
  %v1009 = vld [vmem:[%s3 + $0x10] sm:$0xf]
  %v1010 = vld [vmem:[%s3 + $0x14] sm:$0xf]
  %v1011 = vld [vmem:[%s3 + $0x18] sm:$0xf]
  %v1012 = vld [vmem:[%s3 + $0x1c] sm:$0xf]
  %v1013 = vld [vmem:[%s3 + $0x20] sm:$0xf]
  %v1014 = vld [vmem:[%s3 + $0x24] sm:$0xf]
  %v1015 = vld [vmem:[%s3 + $0x28] sm:$0xf]
  %v1016 = vld [vmem:[%s3 + $0x2c] sm:$0xf]
  %v1017 = vld [vmem:[%s3 + $0x30] sm:$0xf]
  %v1018 = vld [vmem:[%s3 + $0x34] sm:$0xf]
  %v1019 = vld [vmem:[%s3 + $0x38] sm:$0xf]
  %v1020 = vld [vmem:[%s3 + $0x3c] sm:$0xf]
  %v1021 = vld [vmem:[%s3 + $0x40] sm:$0xf]
  %v1022 = vld [vmem:[%s3 + $0x44] sm:$0xf]
  %v1023 = vld [vmem:[%s3 + $0x48] sm:$0xf]
  %v1024 = vld [vmem:[%s3 + $0x4c] sm:$0xf]
  %v1025 = vld [vmem:[%s3 + $0x50] sm:$0xf]
  %v1026 = vld [vmem:[%s3 + $0x54] sm:$0xf]
  %v1027 = vld [vmem:[%s3 + $0x58] sm:$0xf]
  %v1028 = vld [vmem:[%s3 + $0x5c] sm:$0xf]
  %v1029 = vld [vmem:[%s3 + $0x60] sm:$0xf]
  %v1030 = vld [vmem:[%s3 + $0x64] sm:$0xf]
  %v1031 = vld [vmem:[%s3 + $0x68] sm:$0xf]
  %v1032 = vld [vmem:[%s3 + $0x6c] sm:$0xf]
  %v1033 = vld [vmem:[%s3 + $0x70] sm:$0xf]
  %v1034 = vld [vmem:[%s3 + $0x74] sm:$0xf]
  %v1035 = vld [vmem:[%s3 + $0x78] sm:$0xf]
  %v1036 = vld [vmem:[%s3 + $0x7c] sm:$0xf]
  %v1037 = vld [vmem:[%s3 + $0x80] sm:$0xf]
  %v1038 = vld [vmem:[%s3 + $0x84] sm:$0xf]
  %v1039 = vld [vmem:[%s3 + $0x88] sm:$0xf]
  %v1040 = vld [vmem:[%s3 + $0x8c] sm:$0xf]
  %v1041 = vld [vmem:[%s3 + $0x90] sm:$0xf]
  %v1042 = vld [vmem:[%s3 + $0x94] sm:$0xf]
  %v1043 = vld [vmem:[%s3 + $0x98] sm:$0xf]
  %v1044 = vld [vmem:[%s3 + $0x9c] sm:$0xf]
  %v1045 = vld [vmem:[%s3 + $0xa0] sm:$0xf]
  %v1046 = vld [vmem:[%s3 + $0xa4] sm:$0xf]
  %v1047 = vld [vmem:[%s3 + $0xa8] sm:$0xf]
  %v1048 = vld [vmem:[%s3 + $0xac] sm:$0xf]
  %v1049 = vld [vmem:[%s3 + $0xb0] sm:$0xf]
  %v1050 = vld [vmem:[%s3 + $0xb4] sm:$0xf]
  %v1051 = vld [vmem:[%s3 + $0xb8] sm:$0xf]
  %v1052 = vld [vmem:[%s3 + $0xbc] sm:$0xf]
  %v1053 = vld [vmem:[%s3 + $0xc0] sm:$0xf]
  %v1054 = vld [vmem:[%s3 + $0xc4] sm:$0xf]
  %v1055 = vld [vmem:[%s3 + $0xc8] sm:$0xf]
  %v1056 = vld [vmem:[%s3 + $0xcc] sm:$0xf]
  %v1057 = vld [vmem:[%s3 + $0xd0] sm:$0xf]
  %v1058 = vld [vmem:[%s3 + $0xd4] sm:$0xf]
  %v1059 = vld [vmem:[%s3 + $0xd8] sm:$0xf]
  %v1060 = vld [vmem:[%s3 + $0xdc] sm:$0xf]
  %v1061 = vld [vmem:[%s3 + $0xe0] sm:$0xf]
  %v1062 = vld [vmem:[%s3 + $0xe4] sm:$0xf]
  %v1063 = vld [vmem:[%s3 + $0xe8] sm:$0xf]
  %v1064 = vld [vmem:[%s3 + $0xec] sm:$0xf]
  %v1065 = vld [vmem:[%s3 + $0xf0] sm:$0xf]
  %v1066 = vld [vmem:[%s3 + $0xf4] sm:$0xf]
  %v1067 = vld [vmem:[%s3 + $0xf8] sm:$0xf]
  %v1068 = vld [vmem:[%s3 + $0xfc] sm:$0xf]
  %v1069 = vld [vmem:[%s4] sm:$0x1]
  %v1071 = vlaneseq
  %v1072 = vshrl.u32 %v1071, 7
  %v1073 = vsub.s32 0, %v1072
  %v1074 = vrot.slane %v1069, %v1073
  %v1140 = vunpack.c.l.b16 %v1005
  %v1141 = vunpack.c.l.b16 %v1006
  %v1142 = vunpack.c.l.b16 %v1007
  %v1143 = vunpack.c.l.b16 %v1008
  %v1144 = vunpack.c.l.b16 %v1009
  %v1145 = vunpack.c.l.b16 %v1010
  %v1146 = vunpack.c.l.b16 %v1011
  %v1147 = vunpack.c.l.b16 %v1012
  %v1148 = vunpack.c.l.b16 %v1013
  %v1149 = vunpack.c.l.b16 %v1014
  %v1150 = vunpack.c.l.b16 %v1015
  %v1151 = vunpack.c.l.b16 %v1016
  %v1152 = vunpack.c.l.b16 %v1017
  %v1153 = vunpack.c.l.b16 %v1018
  %v1154 = vunpack.c.l.b16 %v1019
  %v1155 = vunpack.c.l.b16 %v1020
  %v1156 = vunpack.c.l.b16 %v1021
  %v1157 = vunpack.c.l.b16 %v1022
  %v1158 = vunpack.c.l.b16 %v1023
  %v1159 = vunpack.c.l.b16 %v1024
  %v1160 = vunpack.c.l.b16 %v1025
  %v1161 = vunpack.c.l.b16 %v1026
  %v1162 = vunpack.c.l.b16 %v1027
  %v1163 = vunpack.c.l.b16 %v1028
  %v1164 = vunpack.c.l.b16 %v1029
  %v1165 = vunpack.c.l.b16 %v1030
  %v1166 = vunpack.c.l.b16 %v1031
  %v1167 = vunpack.c.l.b16 %v1032
  %v1168 = vunpack.c.l.b16 %v1033
  %v1169 = vunpack.c.l.b16 %v1034
  %v1170 = vunpack.c.l.b16 %v1035
  %v1171 = vunpack.c.l.b16 %v1036
  %v1172 = vunpack.c.l.b16 %v1037
  %v1173 = vunpack.c.l.b16 %v1038
  %v1174 = vunpack.c.l.b16 %v1039
  %v1175 = vunpack.c.l.b16 %v1040
  %v1176 = vunpack.c.l.b16 %v1041
  %v1177 = vunpack.c.l.b16 %v1042
  %v1178 = vunpack.c.l.b16 %v1043
  %v1179 = vunpack.c.l.b16 %v1044
  %v1180 = vunpack.c.l.b16 %v1045
  %v1181 = vunpack.c.l.b16 %v1046
  %v1182 = vunpack.c.l.b16 %v1047
  %v1183 = vunpack.c.l.b16 %v1048
  %v1184 = vunpack.c.l.b16 %v1049
  %v1185 = vunpack.c.l.b16 %v1050
  %v1186 = vunpack.c.l.b16 %v1051
  %v1187 = vunpack.c.l.b16 %v1052
  %v1188 = vunpack.c.l.b16 %v1053
  %v1189 = vunpack.c.l.b16 %v1054
  %v1190 = vunpack.c.l.b16 %v1055
  %v1191 = vunpack.c.l.b16 %v1056
  %v1192 = vunpack.c.l.b16 %v1057
  %v1193 = vunpack.c.l.b16 %v1058
  %v1194 = vunpack.c.l.b16 %v1059
  %v1195 = vunpack.c.l.b16 %v1060
  %v1196 = vunpack.c.l.b16 %v1061
  %v1197 = vunpack.c.l.b16 %v1062
  %v1198 = vunpack.c.l.b16 %v1063
  %v1199 = vunpack.c.l.b16 %v1064
  %v1200 = vunpack.c.l.b16 %v1065
  %v1201 = vunpack.c.l.b16 %v1066
  %v1202 = vunpack.c.l.b16 %v1067
  %v1203 = vunpack.c.l.b16 %v1068
  %v1204 = vpack.c.b16 %v1141, %v1140
  %v1205 = vpack.c.b16 %v1143, %v1142
  %v1206 = vpack.c.b16 %v1145, %v1144
  %v1207 = vpack.c.b16 %v1147, %v1146
  %v1208 = vpack.c.b16 %v1149, %v1148
  %v1209 = vpack.c.b16 %v1151, %v1150
  %v1210 = vpack.c.b16 %v1153, %v1152
  %v1211 = vpack.c.b16 %v1155, %v1154
  %v1212 = vpack.c.b16 %v1157, %v1156
  %v1213 = vpack.c.b16 %v1159, %v1158
  %v1214 = vpack.c.b16 %v1161, %v1160
  %v1215 = vpack.c.b16 %v1163, %v1162
  %v1216 = vpack.c.b16 %v1165, %v1164
  %v1217 = vpack.c.b16 %v1167, %v1166
  %v1218 = vpack.c.b16 %v1169, %v1168
  %v1219 = vpack.c.b16 %v1171, %v1170
  %v1220 = vpack.c.b16 %v1173, %v1172
  %v1221 = vpack.c.b16 %v1175, %v1174
  %v1222 = vpack.c.b16 %v1177, %v1176
  %v1223 = vpack.c.b16 %v1179, %v1178
  %v1224 = vpack.c.b16 %v1181, %v1180
  %v1225 = vpack.c.b16 %v1183, %v1182
  %v1226 = vpack.c.b16 %v1185, %v1184
  %v1227 = vpack.c.b16 %v1187, %v1186
  %v1228 = vpack.c.b16 %v1189, %v1188
  %v1229 = vpack.c.b16 %v1191, %v1190
  %v1230 = vpack.c.b16 %v1193, %v1192
  %v1231 = vpack.c.b16 %v1195, %v1194
  %v1232 = vpack.c.b16 %v1197, %v1196
  %v1233 = vpack.c.b16 %v1199, %v1198
  %v1234 = vpack.c.b16 %v1201, %v1200
  %v1235 = vpack.c.b16 %v1203, %v1202
  %1268 = vmatprep.subr.bf16.mxu0 0
  %1269 = vmatpush1.bf16.msra.mxu0 %v1204
  %1270 = vmatprep.subr.bf16.mxu0 0
  %1271 = vmatpush1.bf16.msra.mxu0 %v1205
  %1272 = vmatprep.subr.bf16.mxu0 0
  %1273 = vmatpush1.bf16.msra.mxu0 %v1206
  %1274 = vmatprep.subr.bf16.mxu0 0
  %1275 = vmatpush1.bf16.msra.mxu0 %v1207
  %1276 = vmatprep.subr.bf16.mxu0 0
  %1277 = vmatpush1.bf16.msra.mxu0 %v1208
  %1278 = vmatprep.subr.bf16.mxu0 0
  %1279 = vmatpush1.bf16.msra.mxu0 %v1209
  %1280 = vmatprep.subr.bf16.mxu0 0
  %1281 = vmatpush1.bf16.msra.mxu0 %v1210
  %1282 = vmatprep.subr.bf16.mxu0 0
  %1283 = vmatpush1.bf16.msra.mxu0 %v1211
  %1284 = vmatprep.subr.bf16.mxu0 0
  %1285 = vmatpush1.bf16.msra.mxu0 %v1212
  %1286 = vmatprep.subr.bf16.mxu0 0
  %1287 = vmatpush1.bf16.msra.mxu0 %v1213
  %1288 = vmatprep.subr.bf16.mxu0 0
  %1289 = vmatpush1.bf16.msra.mxu0 %v1214
  %1290 = vmatprep.subr.bf16.mxu0 0
  %1291 = vmatpush1.bf16.msra.mxu0 %v1215
  %1292 = vmatprep.subr.bf16.mxu0 0
  %1293 = vmatpush1.bf16.msra.mxu0 %v1216
  %1294 = vmatprep.subr.bf16.mxu0 0
  %1295 = vmatpush1.bf16.msra.mxu0 %v1217
  %1296 = vmatprep.subr.bf16.mxu0 0
  %1297 = vmatpush1.bf16.msra.mxu0 %v1218
  %1298 = vmatprep.subr.bf16.mxu0 0
  %1299 = vmatpush1.bf16.msra.mxu0 %v1219
  %1300 = vmatprep.mubr.bf16.mxu0 %v1002
  %1301 = vmatmul.mubr.bf16.gmra.mrb[0].mxu0 %v1001
  %v1302 = vpop.f32.mrb[0].mxu0
  %v1303 = vadd.f32 %v1074, %v1302
  %v1304 = vpop.f32.mrb[0].mxu0
  %v1305 = vpop.f32.mrb[0].mxu0
  %v1306 = vpop.f32.mrb[0].mxu0
  %1307 = vdwg.mxu0
  %1308 = vmatprep.subr.bf16.mxu0 0
  %1309 = vmatpush1.bf16.msra.mxu0 %v1220
  %1310 = vmatprep.subr.bf16.mxu0 0
  %1311 = vmatpush1.bf16.msra.mxu0 %v1221
  %1312 = vmatprep.subr.bf16.mxu0 0
  %1313 = vmatpush1.bf16.msra.mxu0 %v1222
  %1314 = vmatprep.subr.bf16.mxu0 0
  %1315 = vmatpush1.bf16.msra.mxu0 %v1223
  %1316 = vmatprep.subr.bf16.mxu0 0
  %1317 = vmatpush1.bf16.msra.mxu0 %v1224
  %1318 = vmatprep.subr.bf16.mxu0 0
  %1319 = vmatpush1.bf16.msra.mxu0 %v1225
  %1320 = vmatprep.subr.bf16.mxu0 0
  %1321 = vmatpush1.bf16.msra.mxu0 %v1226
  %1322 = vmatprep.subr.bf16.mxu0 0
  %1323 = vmatpush1.bf16.msra.mxu0 %v1227
  %1324 = vmatprep.subr.bf16.mxu0 0
  %1325 = vmatpush1.bf16.msra.mxu0 %v1228
  %1326 = vmatprep.subr.bf16.mxu0 0
  %1327 = vmatpush1.bf16.msra.mxu0 %v1229
  %1328 = vmatprep.subr.bf16.mxu0 0
  %1329 = vmatpush1.bf16.msra.mxu0 %v1230
  %1330 = vmatprep.subr.bf16.mxu0 0
  %1331 = vmatpush1.bf16.msra.mxu0 %v1231
  %1332 = vmatprep.subr.bf16.mxu0 0
  %1333 = vmatpush1.bf16.msra.mxu0 %v1232
  %1334 = vmatprep.subr.bf16.mxu0 0
  %1335 = vmatpush1.bf16.msra.mxu0 %v1233
  %1336 = vmatprep.subr.bf16.mxu0 0
  %1337 = vmatpush1.bf16.msra.mxu0 %v1234
  %1338 = vmatprep.subr.bf16.mxu0 0
  %1339 = vmatpush1.bf16.msra.mxu0 %v1235
  %1340 = vmatprep.mubr.bf16.mxu0 %v1004
  %1341 = vmatmul.mubr.bf16.gmra.mrb[0].mxu0 %v1003
  %v1342 = vpop.f32.mrb[0].mxu0
  %v1343 = vadd.f32 %v1303, %v1342
  %v1344 = vpop.f32.mrb[0].mxu0
  %v1345 = vpop.f32.mrb[0].mxu0
  %v1346 = vpop.f32.mrb[0].mxu0
  %1347 = vdwg.mxu0
  %v1348 = vmax.f32 %v1343, 0.0
  %v1349 = vpack.c.bf16 %v1348, %v1348
  %v1350 = vld [vmem:[%s5] sm:$0xf]
  %v1351 = vld [vmem:[%s5 + $0x4] sm:$0xf]
  %v1352 = vld [vmem:[%s5 + $0x8] sm:$0xf]
  %v1353 = vld [vmem:[%s5 + $0xc] sm:$0xf]
  %v1354 = vld [vmem:[%s5 + $0x10] sm:$0xf]
  %v1355 = vld [vmem:[%s5 + $0x14] sm:$0xf]
  %v1356 = vld [vmem:[%s5 + $0x18] sm:$0xf]
  %v1357 = vld [vmem:[%s5 + $0x1c] sm:$0xf]
  %v1358 = vld [vmem:[%s5 + $0x20] sm:$0xf]
  %v1359 = vld [vmem:[%s5 + $0x24] sm:$0xf]
  %v1360 = vld [vmem:[%s5 + $0x28] sm:$0xf]
  %v1361 = vld [vmem:[%s5 + $0x2c] sm:$0xf]
  %v1362 = vld [vmem:[%s5 + $0x30] sm:$0xf]
  %v1363 = vld [vmem:[%s5 + $0x34] sm:$0xf]
  %v1364 = vld [vmem:[%s5 + $0x38] sm:$0xf]
  %v1365 = vld [vmem:[%s5 + $0x3c] sm:$0xf]
  %v1366 = vld [vmem:[%s6] sm:$0x1]
  %v1368 = vlaneseq
  %v1369 = vshrl.u32 %v1368, 7
  %v1370 = vsub.s32 0, %v1369
  %v1371 = vrot.slane %v1366, %v1370
  %v1389 = vunpack.c.l.b16 %v1350
  %v1390 = vunpack.c.l.b16 %v1351
  %v1391 = vunpack.c.l.b16 %v1352
  %v1392 = vunpack.c.l.b16 %v1353
  %v1393 = vunpack.c.l.b16 %v1354
  %v1394 = vunpack.c.l.b16 %v1355
  %v1395 = vunpack.c.l.b16 %v1356
  %v1396 = vunpack.c.l.b16 %v1357
  %v1397 = vunpack.c.l.b16 %v1358
  %v1398 = vunpack.c.l.b16 %v1359
  %v1399 = vunpack.c.l.b16 %v1360
  %v1400 = vunpack.c.l.b16 %v1361
  %v1401 = vunpack.c.l.b16 %v1362
  %v1402 = vunpack.c.l.b16 %v1363
  %v1403 = vunpack.c.l.b16 %v1364
  %v1404 = vunpack.c.l.b16 %v1365
  %v1405 = vpack.c.b16 %v1390, %v1389
  %v1406 = vpack.c.b16 %v1392, %v1391
  %v1407 = vpack.c.b16 %v1394, %v1393
  %v1408 = vpack.c.b16 %v1396, %v1395
  %v1409 = vpack.c.b16 %v1398, %v1397
  %v1410 = vpack.c.b16 %v1400, %v1399
  %v1411 = vpack.c.b16 %v1402, %v1401
  %v1412 = vpack.c.b16 %v1404, %v1403
  %1421 = vmatprep.subr.bf16.mxu0 0
  %1422 = vmatpush1.bf16.msra.mxu0 %v1405
  %1423 = vmatprep.subr.bf16.mxu0 0
  %1424 = vmatpush1.bf16.msra.mxu0 %v1406
  %1425 = vmatprep.subr.bf16.mxu0 0
  %1426 = vmatpush1.bf16.msra.mxu0 %v1407
  %1427 = vmatprep.subr.bf16.mxu0 0
  %1428 = vmatpush1.bf16.msra.mxu0 %v1408
  %1429 = vmatprep.subr.bf16.mxu0 0
  %1430 = vmatpush1.bf16.msra.mxu0 %v1409
  %1431 = vmatprep.subr.bf16.mxu0 0
  %1432 = vmatpush1.bf16.msra.mxu0 %v1410
  %1433 = vmatprep.subr.bf16.mxu0 0
  %1434 = vmatpush1.bf16.msra.mxu0 %v1411
  %1435 = vmatprep.subr.bf16.mxu0 0
  %1436 = vmatpush1.bf16.msra.mxu0 %v1412
  %1437 = vmatprep.subr.bf16.mxu0 0
  %1438 = vmatpush1.bf16.msra.mxu0 0
  %1439 = vmatprep.subr.bf16.mxu0 0
  %1440 = vmatpush1.bf16.msra.mxu0 0
  %1441 = vmatprep.subr.bf16.mxu0 0
  %1442 = vmatpush1.bf16.msra.mxu0 0
  %1443 = vmatprep.subr.bf16.mxu0 0
  %1444 = vmatpush1.bf16.msra.mxu0 0
  %1445 = vmatprep.subr.bf16.mxu0 0
  %1446 = vmatpush1.bf16.msra.mxu0 0
  %1447 = vmatprep.subr.bf16.mxu0 0
  %1448 = vmatpush1.bf16.msra.mxu0 0
  %1449 = vmatprep.subr.bf16.mxu0 0
  %1450 = vmatpush1.bf16.msra.mxu0 0
  %1451 = vmatprep.subr.bf16.mxu0 0
  %1452 = vmatpush1.bf16.msra.mxu0 0
  %1453 = vmatprep.mubr.bf16.mxu0 0
  %1454 = vmatmul.mubr.bf16.gmra.mrb[0].mxu0 %v1349
  %v1455 = vpop.f32.mrb[0].mxu0
  %v1456 = vadd.f32 %v1371, %v1455
  %v1457 = vpop.f32.mrb[0].mxu0
  %v1458 = vpop.f32.mrb[0].mxu0
  %v1459 = vpop.f32.mrb[0].mxu0
  %1460 = vdwg.mxu0
  %v1461 = vxor.u32 %v1456, 2147483648
  %v1462 = vmul.f32 %v1461, 1.442695
  %v1463 = vpow.pop %v1462
  %v1464 = vadd.f32 %v1463, 1.0
  %v1465 = vrcp.pop %v1464
  %v1466 = vmul.f32 1.0, %v1465
  %1467 = vst [vmem:[%s7] sm:$0xff] %v1466
  // Predicated region
  $region30: #{simple_neural_network.1} parent=0 // pred_check
    _
  $region31: #{simple_neural_network.1} parent=0 // pred_check_branch
    %1469 = sbr.rel (0) target = $region33
  $region32: #{simple_neural_network.1} parent=0 // pred_region
    _
  $region33: #{simple_neural_network.1} parent=0 // pred_fallthru
    _
  // Predicated region
  $region34: #{simple_neural_network.1} parent=0 // pred_check
    _
  $region35: #{simple_neural_network.1} parent=0 // pred_check_branch
    %1471 = sbr.rel (0) target = $region37
  $region36: #{simple_neural_network.1} parent=0 // pred_region
    _
  $region37: #{simple_neural_network.1} parent=0 // pred_fallthru
    _

</llo_original>
